<compile_context>
chip_gen: v6e
topology: v6e:2x2x1
jax: 0.10.0
libtpu: 0.0.40
codegen_flags: <defaults>
</compile_context>

<pallas_src>
import functools

import jax
import jax.numpy as jnp
from jax.experimental import pallas as pl
from jax.experimental.pallas import tpu as pltpu

_LANE = 128
_SUB = 8


def _rpn_regr_loss_kernel(yt_ref, yp_ref, out_ref, acc_ref, *, sigma):
    """One (tile_r, 128)-anchor tile of the masked smooth-L1 reduction.

    yt_ref  : (3, tile_r, 128) f32  target slab; row 0 = cls, rows 1:3 = regr coords
    yp_ref  : (2, tile_r, 128) f32  predicted regression coords
    out_ref : (1, 2, 128)      f32  per-core partials; [.,0,:] loss sum, [.,1,:] count
    acc_ref : (2, tile_r, 128) f32  merged accumulator (slab 0 = loss, slab 1 = mask)
    """
    step = pl.program_id(1)

    @pl.when(step == 0)
    def _init():
        acc_ref[...] = jnp.zeros_like(acc_ref)

    yt = yt_ref[...]                                   # (3, tile_r, 128)
    cls = yt[0]                                        # (tile_r, 128)
    regr = yt[1:3]                                     # (2, tile_r, 128)
    pred = yp_ref[...]                                 # (2, tile_r, 128)

    # Positive-anchor mask computed in-kernel (exact compare, matches the reference;
    # padding anchors carry cls == 0 so they never contribute).
    mask = (cls == 1.0).astype(jnp.float32)            # (tile_r, 128)

    diff = jnp.abs(regr - pred)                        # (2, tile_r, 128)
    quad = (0.5 * sigma) * diff * diff                 # |diff| <  1/sigma branch
    lin = diff - (0.5 / sigma)                         # |diff| >= 1/sigma branch
    elem = jnp.where(diff < (1.0 / sigma), quad, lin)  # smooth L1 per element
    loss = (elem[0] + elem[1]) * mask                  # per-anchor loss, masked

    # Merged accumulator: one load + one store per step.
    acc_ref[...] += jnp.concatenate([loss[None], mask[None]], axis=0)

    @pl.when(step == pl.num_programs(1) - 1)
    def _finalize():
        # Sublane reduce only; the tiny cross-lane reduce + divide happen in the
        # jnp epilogue so per-core partials can be combined (v7x two-core path).
        out_ref[0] = jnp.sum(acc_ref[...], axis=1)     # (2, 128)


def rpn_regr_loss(y_pred, y_true, *, sigma=9.0, max_tile_rows=2048):
    """y_pred: [B, N, 2] predictions, y_true: [B, N, 3] (cls, dy, dh).

    Matches RPN_REGR_Loss.forward (only batch element 0 is used).
    Returns a scalar float32 loss.
    """
    N = y_true.shape[1]

    # Coord-major, lane/sublane-dense slabs (single transpose+pad fusion each).
    yt = y_true[0].astype(jnp.float32).T               # (3, N): cls, regr0, regr1
    yp = y_pred[0].astype(jnp.float32).T               # (2, N)

    # ---- tiling: anchors -> (rows, 128); rows tiled in multiples of 8 ----------
    max_tile_rows = min(max(_SUB, (int(max_tile_rows) // _SUB) * _SUB), 4096)
    rows = -(-N // _LANE)                              # cdiv(N, 128)
    if rows <= max_tile_rows:
        tile_r = -(-rows // _SUB) * _SUB               # single grid step
        n_par = 1
    else:
        tile_r = max_tile_rows
        n_par = 2                                      # v7x: one half per TensorCore
    steps_per_core = -(-rows // (tile_r * n_par))
    rows_pad = steps_per_core * tile_r * n_par
    n_pad = rows_pad * _LANE
    pad = n_pad - N

    yt_slab = jnp.pad(yt, ((0, 0), (0, pad))).reshape(3, rows_pad, _LANE)
    yp_slab = jnp.pad(yp, ((0, 0), (0, pad))).reshape(2, rows_pad, _LANE)

    grid = (n_par, steps_per_core)
    spc = steps_per_core
    kernel = functools.partial(_rpn_regr_loss_kernel, sigma=float(sigma))

    # Advisory cost hint: memory-bound elementwise reduction (~16 flops / 20 B per anchor).
    flops = 16 * n_pad
    bytes_accessed = 4 * (5 * n_pad + n_par * 2 * _LANE)

    partials = pl.pallas_call(
        kernel,
        out_shape=jax.ShapeDtypeStruct((n_par, 2, _LANE), jnp.float32),
        grid_spec=pltpu.PrefetchScalarGridSpec(
            num_scalar_prefetch=0,
            grid=grid,
            in_specs=[
                pl.BlockSpec((3, tile_r, _LANE), lambda c, i: (0, c * spc + i, 0)),
                pl.BlockSpec((2, tile_r, _LANE), lambda c, i: (0, c * spc + i, 0)),
            ],
            out_specs=pl.BlockSpec((1, 2, _LANE), lambda c, i: (c, 0, 0)),
            scratch_shapes=[
                pltpu.VMEM((2, tile_r, _LANE), jnp.float32),   # merged loss+count acc
            ],
        ),
        compiler_params=pltpu.CompilerParams(
            # Reduction axis must stay "arbitrary" (shared accumulator); the leading
            # axis is independent per-core work and may be sharded across TCs.
            dimension_semantics=("parallel", "arbitrary")),
        cost_estimate=pl.CostEstimate(
            flops=flops, transcendentals=0, bytes_accessed=bytes_accessed),
    )(yt_slab, yp_slab)

    # Tiny epilogue: combine per-core partials, then mean over positive anchors.
    sums = jnp.sum(partials, axis=(0, 2))              # (2,): [loss sum, positive count]
    total, cnt = sums[0], sums[1]
    return jnp.where(cnt > 0.0, total / jnp.maximum(cnt, 1.0), jnp.float32(0.0))


def _reference(y_pred, y_true, *, sigma=9.0):
    """Pure-JAX reference mirroring the PyTorch module (masked-mean form)."""
    cls = y_true[0, :, 0]
    regr = y_true[0, :, 1:3]
    pred = y_pred[0]
    keep = (cls == 1.0)
    diff = jnp.abs(regr - pred)
    less_one = (diff < 1.0 / sigma).astype(jnp.float32)
    loss = less_one * 0.5 * diff ** 2 * sigma + (1.0 - less_one) * (diff - 0.5 / sigma)
    loss = jnp.sum(loss, axis=1)
    cnt = jnp.sum(keep.astype(jnp.float32))
    total = jnp.sum(jnp.where(keep, loss, 0.0))
    return jnp.where(cnt > 0, total / jnp.maximum(cnt, 1.0), 0.0)


def _make_inputs(key, B, N):
    kp, kr, kc = jax.random.split(key, 3)
    y_pred = jax.random.normal(kp, (B, N, 2), dtype=jnp.float32)
    cls = jax.random.randint(kc, (B, N, 1), minval=-1, maxval=2).astype(jnp.float32)
    regr = jax.random.normal(kr, (B, N, 2), dtype=jnp.float32)
    y_true = jnp.concatenate([cls, regr], axis=-1)     # (B, N, 3)
    return y_pred, y_true


if __name__ == "__main__":
    # TODO(synk): the PyTorch try/except fallback (returning 0.0 on malformed inputs)
    # has no JAX equivalent; shape errors surface at trace time instead.
    sigma = 9.0
    key = jax.random.PRNGKey(0)
    k1, k2 = jax.random.split(key)

    # ---- small test (single-tile, grid=(1,1) path) -----------------------------
    B, N = 2, 300
    y_pred, y_true = _make_inputs(k1, B, N)
    loss_fn = jax.jit(functools.partial(rpn_regr_loss, sigma=sigma))
    loss = loss_fn(y_pred, y_true)
    jax.block_until_ready(loss)
    loss_ref = _reference(y_pred, y_true, sigma=sigma)
    assert loss.shape == (), loss.shape
    assert jnp.allclose(loss, loss_ref, atol=1e-4, rtol=1e-4), \
        (float(loss), float(loss_ref))

    # Edge case: no positive anchors -> loss must be exactly 0.0.
    y_true_neg = y_true.at[0, :, 0].set(0.0)
    loss0 = loss_fn(y_pred, y_true_neg)
    jax.block_until_ready(loss0)
    assert jnp.allclose(loss0, 0.0), float(loss0)

    # ---- multi-step + two-way "parallel" path (forced small tile) ---------------
    N2 = 5000
    y_pred2, y_true2 = _make_inputs(k2, B, N2)
    loss_fn2 = jax.jit(functools.partial(rpn_regr_loss, sigma=sigma, max_tile_rows=8))
    loss2 = loss_fn2(y_pred2, y_true2)
    jax.block_until_ready(loss2)
    loss2_ref = _reference(y_pred2, y_true2, sigma=sigma)
    assert jnp.allclose(loss2, loss2_ref, atol=1e-4, rtol=1e-4), \
        (float(loss2), float(loss2_ref))

    print("KERNEL_OK")
</pallas_src>

<mosaic_0001>
module attributes {stable_mosaic.version = 11 : i64} {
  func.func @_rpn_regr_loss_kernel(%arg0: i32, %arg1: i32, %arg2: memref<3x8x128xf32, #tpu.memory_space<vmem>>, %arg3: memref<2x8x128xf32, #tpu.memory_space<vmem>>, %arg4: memref<1x2x128xf32, #tpu.memory_space<vmem>>, %arg5: memref<2x8x128xf32, #tpu.memory_space<vmem>>) attributes {dimension_semantics = [#tpu.dimension_semantics<parallel>, #tpu.dimension_semantics<arbitrary>], iteration_bounds = array<i64: 1, 1>, scalar_prefetch = 0 : i64, scratch_operands = 1 : i64, tpu.core_type = #tpu.core_type<tc>, window_params = [{transform_indices = @transform_0, window_bounds = array<i64: 3, 8, 128>}, {transform_indices = @transform_1, window_bounds = array<i64: 2, 8, 128>}, {transform_indices = @transform_2, window_bounds = array<i64: 1, 2, 128>}]} {
    %c0_i32 = arith.constant 0 : i32
    %0 = arith.cmpi eq, %arg1, %c0_i32 : i32
    %1 = arith.extui %0 : i1 to i32
    %c0_i32_0 = arith.constant 0 : i32
    %2 = arith.cmpi ne, %1, %c0_i32_0 : i32
    scf.if %2 {
      %cst_17 = arith.constant 0.000000e+00 : f32
      %37 = vector.broadcast %cst_17 : f32 to vector<2x8x128xf32>
      %c0_18 = arith.constant 0 : index
      %c0_19 = arith.constant 0 : index
      %c0_20 = arith.constant 0 : index
      %38 = vector.load %arg5[%c0_18, %c0_19, %c0_20] : memref<2x8x128xf32, #tpu.memory_space<vmem>>, vector<2x8x128xf32>
      tpu.vector_store %arg5[%c0_18, %c0_19, %c0_20], %37 {strides = array<i32>} : memref<2x8x128xf32, #tpu.memory_space<vmem>>, vector<2x8x128xf32>,
    } else {
    }
    %c0 = arith.constant 0 : index
    %c0_1 = arith.constant 0 : index
    %c0_2 = arith.constant 0 : index
    %3 = vector.load %arg2[%c0, %c0_1, %c0_2] : memref<3x8x128xf32, #tpu.memory_space<vmem>>, vector<3x8x128xf32>
    %4 = vector.extract_strided_slice %3 {offsets = [0, 0, 0], sizes = [1, 8, 128], strides = [1, 1, 1]} : vector<3x8x128xf32> to vector<1x8x128xf32>
    %5 = vector.shape_cast %4 : vector<1x8x128xf32> to vector<8x128xf32>
    %6 = vector.extract_strided_slice %3 {offsets = [1, 0, 0], sizes = [2, 8, 128], strides = [1, 1, 1]} : vector<3x8x128xf32> to vector<2x8x128xf32>
    %c0_3 = arith.constant 0 : index
    %c0_4 = arith.constant 0 : index
    %c0_5 = arith.constant 0 : index
    %7 = vector.load %arg3[%c0_3, %c0_4, %c0_5] : memref<2x8x128xf32, #tpu.memory_space<vmem>>, vector<2x8x128xf32>
    %cst = arith.constant 1.000000e+00 : f32
    %8 = vector.broadcast %cst : f32 to vector<8x128xf32>
    %9 = arith.cmpf oeq, %5, %8 : vector<8x128xf32>
    %10 = arith.extui %9 : vector<8x128xi1> to vector<8x128xi32>
    %11 = arith.sitofp %10 : vector<8x128xi32> to vector<8x128xf32>
    %12 = arith.subf %6, %7 : vector<2x8x128xf32>
    %13 = math.absf %12 : vector<2x8x128xf32>
    %cst_6 = arith.constant 4.500000e+00 : f32
    %14 = vector.broadcast %cst_6 : f32 to vector<2x8x128xf32>
    %15 = arith.mulf %14, %13 : vector<2x8x128xf32>
    %16 = arith.mulf %15, %13 : vector<2x8x128xf32>
    %cst_7 = arith.constant 0.055555556 : f32
    %17 = vector.broadcast %cst_7 : f32 to vector<2x8x128xf32>
    %18 = arith.subf %13, %17 : vector<2x8x128xf32>
    %cst_8 = arith.constant 0.111111112 : f32
    %19 = vector.broadcast %cst_8 : f32 to vector<2x8x128xf32>
    %20 = arith.cmpf olt, %13, %19 : vector<2x8x128xf32>
    %21 = arith.select %20, %16, %18 : vector<2x8x128xi1>, vector<2x8x128xf32>
    %22 = vector.extract_strided_slice %21 {offsets = [0, 0, 0], sizes = [1, 8, 128], strides = [1, 1, 1]} : vector<2x8x128xf32> to vector<1x8x128xf32>
    %23 = vector.shape_cast %22 : vector<1x8x128xf32> to vector<8x128xf32>
    %24 = vector.extract_strided_slice %21 {offsets = [1, 0, 0], sizes = [1, 8, 128], strides = [1, 1, 1]} : vector<2x8x128xf32> to vector<1x8x128xf32>
    %25 = vector.shape_cast %24 : vector<1x8x128xf32> to vector<8x128xf32>
    %26 = arith.addf %23, %25 : vector<8x128xf32>
    %27 = arith.mulf %26, %11 : vector<8x128xf32>
    %c0_9 = arith.constant 0 : index
    %c0_10 = arith.constant 0 : index
    %c0_11 = arith.constant 0 : index
    %28 = vector.load %arg5[%c0_9, %c0_10, %c0_11] : memref<2x8x128xf32, #tpu.memory_space<vmem>>, vector<2x8x128xf32>
    %29 = vector.shape_cast %27 : vector<8x128xf32> to vector<1x8x128xf32>
    %30 = vector.shape_cast %11 : vector<8x128xf32> to vector<1x8x128xf32>
    %31 = tpu.concatenate %29, %30 in 0 : vector<1x8x128xf32>, vector<1x8x128xf32> -> vector<2x8x128xf32>
    %32 = arith.addf %28, %31 : vector<2x8x128xf32>
    %c0_12 = arith.constant 0 : index
    %c0_13 = arith.constant 0 : index
    %c0_14 = arith.constant 0 : index
    %33 = vector.load %arg5[%c0_12, %c0_13, %c0_14] : memref<2x8x128xf32, #tpu.memory_space<vmem>>, vector<2x8x128xf32>
    tpu.vector_store %arg5[%c0_12, %c0_13, %c0_14], %32 {strides = array<i32>} : memref<2x8x128xf32, #tpu.memory_space<vmem>>, vector<2x8x128xf32>,
    %c0_i32_15 = arith.constant 0 : i32
    %34 = arith.cmpi eq, %arg1, %c0_i32_15 : i32
    %35 = arith.extui %34 : i1 to i32
    %c0_i32_16 = arith.constant 0 : i32
    %36 = arith.cmpi ne, %35, %c0_i32_16 : i32
    scf.if %36 {
      %c0_17 = arith.constant 0 : index
      %c0_18 = arith.constant 0 : index
      %c0_19 = arith.constant 0 : index
      %37 = vector.load %arg5[%c0_17, %c0_18, %c0_19] : memref<2x8x128xf32, #tpu.memory_space<vmem>>, vector<2x8x128xf32>
      %cst_20 = arith.constant dense<0.000000e+00> : vector<2x128xf32>
      %38 = vector.multi_reduction <add>, %37, %cst_20 [1] : vector<2x8x128xf32> to vector<2x128xf32>
      %c0_21 = arith.constant 0 : index
      %c0_22 = arith.constant 0 : index
      %c0_23 = arith.constant 0 : index
      %39 = vector.load %arg4[%c0_21, %c0_22, %c0_23] : memref<1x2x128xf32, #tpu.memory_space<vmem>>, vector<1x2x128xf32>
      %40 = vector.shape_cast %39 : vector<1x2x128xf32> to vector<2x128xf32>
      %41 = vector.shape_cast %38 : vector<2x128xf32> to vector<1x2x128xf32>
      tpu.vector_store %arg4[%c0_21, %c0_22, %c0_23], %41 {strides = array<i32>} : memref<1x2x128xf32, #tpu.memory_space<vmem>>, vector<1x2x128xf32>,
    } else {
    }
    return
  }
  func.func @transform_0(%arg0: i32, %arg1: i32) -> (i32, i32, i32) {
    %c1_i32 = arith.constant 1 : i32
    %0 = arith.muli %arg0, %c1_i32 : i32
    %1 = arith.addi %0, %arg1 : i32
    %c0_i32 = arith.constant 0 : i32
    %c0_i32_0 = arith.constant 0 : i32
    %c0_i32_1 = arith.constant 0 : i32
    return %c0_i32, %1, %c0_i32_0 : i32, i32, i32
  }
  func.func @transform_1(%arg0: i32, %arg1: i32) -> (i32, i32, i32) {
    %c1_i32 = arith.constant 1 : i32
    %0 = arith.muli %arg0, %c1_i32 : i32
    %1 = arith.addi %0, %arg1 : i32
    %c0_i32 = arith.constant 0 : i32
    %c0_i32_0 = arith.constant 0 : i32
    %c0_i32_1 = arith.constant 0 : i32
    return %c0_i32, %1, %c0_i32_0 : i32, i32, i32
  }
  func.func @transform_2(%arg0: i32, %arg1: i32) -> (i32, i32, i32) {
    %c0_i32 = arith.constant 0 : i32
    %c0_i32_0 = arith.constant 0 : i32
    %c0_i32_1 = arith.constant 0 : i32
    return %arg0, %c0_i32, %c0_i32_0 : i32, i32, i32
  }
}

</mosaic_0001>

<llo_original>
// kernel: rpn_regr_loss.1
$region0: #{rpn_regr_loss.1}
  #allocation0 [shape = 'u32[]', space=smem, size = 0x4, offset = 0x4, fixed_abs, tag = 'smem constant byte address 0x4 - core index']
  #allocation1 [shape = 'u32[144,128]{1,0:T(1,128)}', space=vmem, size = 0x12000, scoped, tag = 'internal scratch']
  #allocation2 [shape = 'f32[2,8,128]{2,1,0:T(8,128)}', space=vmem, size = 0x2000, scoped, tag = 'scratch operand']
  %s0 = inlined_call_operand.vmem [shape: f32[3,8,128], index: 0, kind: input, shape index: {}]
  %s1 = inlined_call_operand.vmem [shape: f32[2,8,128], index: 1, kind: input, shape index: {}]
  %s2 = inlined_call_operand.vmem [shape: f32[1,2,128], index: 2, kind: output, shape index: {}]
  %s3 = sld [smem:[#allocation0]]
  $region26: #{rpn_regr_loss.1} parent=0
    _
  %s5 = ssub.s32 1, %s3
  %s6 = scalar_select 0, %s5, %s3
  // Predicated region
  $region2: #{rpn_regr_loss.1} parent=0 // pred_check
    _
  $region3: #{rpn_regr_loss.1} parent=0 // pred_check_branch
    %8 = sbr.rel (0) target = $region5
  $region4: #{rpn_regr_loss.1} parent=0 // pred_region
    %s9 = sadd.s32 0, 0
    %p10 = scmp.lt.s32.totalorder %s9, 0
    %s11 = scalar_select %p10, %s9, 0
    %s12 = smul.addr %s11, 8
    %s13 = scalar_lea.vmem %s0, %s12
    %s14 = sadd.s32 0, 0
  $region5: #{rpn_regr_loss.1} parent=0 // pred_fallthru
    _
  // Predicated region
  $region6: #{rpn_regr_loss.1} parent=0 // pred_check
    _
  $region7: #{rpn_regr_loss.1} parent=0 // pred_check_branch
    %16 = sbr.rel (0) target = $region9
  $region8: #{rpn_regr_loss.1} parent=0 // pred_region
    %s17 = sadd.s32 0, 0
    %p18 = scmp.lt.s32.totalorder %s17, 0
    %s19 = scalar_select %p18, %s17, 0
    %s20 = smul.addr %s19, 8
    %s21 = scalar_lea.vmem %s1, %s20
    %s22 = sadd.s32 0, 0
  $region9: #{rpn_regr_loss.1} parent=0 // pred_fallthru
    _
  %s23 = sadd.s32 0, 0
  %p24 = scmp.lt.s32.totalorder %s23, 0
  %s25 = scalar_select %p24, %s23, 0
  %s26 = smul.addr %s25, 8
  %s27 = scalar_lea.vmem %s0, %s26
  %s28 = sadd.s32 0, 0
  %p29 = scmp.lt.s32.totalorder %s28, 0
  %s30 = scalar_select %p29, %s28, 0
  %s31 = smul.addr %s30, 8
  %s32 = scalar_lea.vmem %s1, %s31
  %s33 = sadd.s32 0, 0
  %p34 = scmp.lt.s32.totalorder %s33, 0
  %s35 = scalar_select %p34, %s33, 0
  %s36 = smul.addr %s35, 8
  %s37 = scalar_lea.vmem %s0, %s36
  %s38 = sadd.s32 0, 0
  %s39 = sadd.s32 0, 0
  %p40 = scmp.lt.s32.totalorder %s39, 0
  %s41 = scalar_select %p40, %s39, 0
  %s42 = smul.addr %s41, 8
  %s43 = scalar_lea.vmem %s1, %s42
  %s44 = sadd.s32 0, 0
  %p45 = scmp.eq.s32.totalorder 0, 0
  // Predicated region
  $region10: #{rpn_regr_loss.1} parent=0 // pred_check
    %p46 = pneg %p45
  $region11: #{rpn_regr_loss.1} parent=0 // pred_check_branch
    %48 = sbr.rel (%p46) target = $region13
  $region12: #{rpn_regr_loss.1} parent=0 // pred_region
    %49 = vst [vmem:[#allocation2] sm:$0xff] 0.0
    %50 = vst [vmem:[#allocation2 + $0x8] sm:$0xff] 0.0
  $region13: #{rpn_regr_loss.1} parent=0 // pred_fallthru
    _
  %v51 = vld [vmem:[%s37] sm:$0xff]
  %v52 = vld [vmem:[%s37 + $0x8] sm:$0xff]
  %v53 = vld [vmem:[%s37 + $0x10] sm:$0xff]
  %v54 = vld [vmem:[%s43] sm:$0xff]
  %v55 = vld [vmem:[%s43 + $0x8] sm:$0xff]
  %vm56 = vcmp.eq.f32.partialorder %v51, 1.0
  %v57 = vsel %vm56, 1, 0
  %v58 = vcvt.s32.f32 %v57
  %v59 = vsub.f32 %v52, %v54
  %v60 = vsub.f32 %v53, %v55
  %v61 = vand.u32 2147483647, %v59
  %v62 = vand.u32 2147483647, %v60
  %v63 = vmul.f32 %v61, 4.5
  %v64 = vmul.f32 %v62, 4.5
  %v65 = vmul.f32 %v63, %v61
  %v66 = vmul.f32 %v64, %v62
  %v67 = vsub.f32 %v61, 0.055555556
  %v68 = vsub.f32 %v62, 0.055555556
  %vm69 = vcmp.lt.f32.partialorder %v61, 0.11111111
  %vm70 = vcmp.lt.f32.partialorder %v62, 0.11111111
  %v71 = vsel %vm69, %v65, %v67
  %v72 = vsel %vm70, %v66, %v68
  %v73 = vadd.f32 %v71, %v72
  %v74 = vmul.f32 %v73, %v58
  %v75 = vld [vmem:[#allocation2] sm:$0xff]
  %v76 = vld [vmem:[#allocation2 + $0x8] sm:$0xff]
  %v77 = vadd.f32 %v75, %v74
  %v78 = vadd.f32 %v76, %v58
  %79 = vst [vmem:[#allocation2] sm:$0xff] %v77
  %80 = vst [vmem:[#allocation2 + $0x8] sm:$0xff] %v78
  // Predicated region
  $region14: #{rpn_regr_loss.1} parent=0 // pred_check
    %p81 = pneg %p45
  $region15: #{rpn_regr_loss.1} parent=0 // pred_check_branch
    %83 = sbr.rel (%p81) target = $region17
  $region16: #{rpn_regr_loss.1} parent=0 // pred_region
    %v84 = vld [vmem:[#allocation2] sm:$0xff]
    %v85 = vld [vmem:[#allocation2 + $0x8] sm:$0xff]
    %v86 = vrot.slane %v84, 4
    %v87 = vadd.f32 %v84, %v86
    %v88 = vrot.slane %v87, 2
    %v89 = vadd.f32 %v87, %v88
    %v90 = vrot.slane %v89, 1
    %v91 = vadd.f32 %v89, %v90
    %v92 = vrot.slane %v85, 4
    %v93 = vadd.f32 %v85, %v92
    %v94 = vrot.slane %v93, 2
    %v95 = vadd.f32 %v93, %v94
    %v96 = vrot.slane %v95, 1
    %v97 = vadd.f32 %v95, %v96
    %vm100 = vcmask 1041409
    %v101 = vsel %vm100, %v97, %v91
    %103 = vst [vmem:[%s2] sm:$0x3] %v101
  $region17: #{rpn_regr_loss.1} parent=0 // pred_fallthru
    _
  // Predicated region
  $region18: #{rpn_regr_loss.1} parent=0 // pred_check
    _
  $region19: #{rpn_regr_loss.1} parent=0 // pred_check_branch
    %105 = sbr.rel (0) target = $region21
  $region20: #{rpn_regr_loss.1} parent=0 // pred_region
    _
  $region21: #{rpn_regr_loss.1} parent=0 // pred_fallthru
    _
  // Predicated region
  $region22: #{rpn_regr_loss.1} parent=0 // pred_check
    _
  $region23: #{rpn_regr_loss.1} parent=0 // pred_check_branch
    %107 = sbr.rel (0) target = $region25
  $region24: #{rpn_regr_loss.1} parent=0 // pred_region
    _
  $region25: #{rpn_regr_loss.1} parent=0 // pred_fallthru
    _

</llo_original>
